<compile_context>
chip_gen: v7x
topology: tpu7x:2x2x1
jax: 0.10.0
libtpu: 0.0.40
codegen_flags: <defaults>
</compile_context>

<pallas_src>
import math

import jax
import jax.numpy as jnp
from jax.experimental import pallas as pl
from jax.experimental.pallas import tpu as pltpu

SUBLANES = 8
LANES = 128


def _actnorm_fwd_kernel(z_ref, exp_scale_ref, shift_ref, y_ref):
    # z_ref / y_ref: (tile_rows, W); exp_scale_ref / shift_ref: (1, W) f32, resident.
    z = z_ref[...].astype(jnp.float32)
    y_ref[...] = (exp_scale_ref[...] * z + shift_ref[...]).astype(y_ref.dtype)


def _choose_fold(rows, d, max_width=4096):
    """How many consecutive rows to fold into one lane-dense slab row.

    Returns (fold, padded_rows).  padded_rows == rows unless no divisor of
    `rows` keeps the slab at least 128 lanes wide, in which case the row count
    is padded up to a multiple of a lane-dense fold (pad < fold rows).
    """
    if d >= LANES or rows <= 1:
        return 1, rows
    max_f = max(1, min(rows, max_width // d))
    best = None
    for f in range(max_f, 0, -1):
        if rows % f == 0:
            if (d * f) % LANES == 0:
                return f, rows               # exact divisor, width multiple of 128
            if best is None and d * f >= LANES:
                best = f                     # exact divisor, still lane-dense
    if best is not None:
        return best, rows
    # No divisor keeps the stores lane-dense: pad the row count instead of
    # falling back to heavily masked (few-lane) vst's (~4x-class penalty).
    g = LANES // math.gcd(d, LANES)          # smallest fold with d*fold % 128 == 0
    k = max(1, min((max_width // d) // g, -(-rows // g)))
    fold = g * k
    padded_rows = -(-rows // fold) * fold
    return fold, padded_rows


def _vmem_limits():
    """(vmem_limit_bytes to pass to the compiler, byte budget for our tiles)."""
    phys = None
    try:
        phys = int(pltpu.get_tpu_info().vmem_capacity_bytes)
    except Exception:
        phys = None
    if phys is None:
        try:
            kind = jax.devices()[0].device_kind.lower()
            phys = 64 * 1024 * 1024 if ("v7" in kind or "7x" in kind) else 128 * 1024 * 1024
        except Exception:
            phys = 64 * 1024 * 1024          # conservative default
    # Leave headroom for the compiler's own scratch: 48 MiB on v7x, 96 on v5e/v6e.
    limit = min(phys * 3 // 4, 96 * 1024 * 1024)
    # Our double-buffered in+out tiles get ~2/3 of that.
    budget = limit * 2 // 3
    return limit, budget


def _pick_tile_rows(slab_rows, width, itemsize, vmem_budget):
    """Biggest row tile (<=1024) under the VMEM budget, with >=2 grid steps."""
    if slab_rows <= SUBLANES:
        return slab_rows                     # single full-extent block
    bytes_per_row = 4 * width * max(itemsize, 1)   # 2 bufs x (in + out)
    by_vmem = max(SUBLANES, vmem_budget // bytes_per_row)
    # Cap at half the slab (rounded up to a sublane multiple) so the "parallel"
    # axis always has >= 2 steps and both v7x TensorCores get work.
    half = -(-slab_rows // 2)
    half = -(-half // SUBLANES) * SUBLANES
    tile = min(1024, by_vmem, half)
    tile = max(SUBLANES, (tile // SUBLANES) * SUBLANES)
    if tile >= slab_rows:
        return slab_rows
    # Prefer an even number of steps when the step count is small (balances
    # the two v7x TensorCores; costs at most one extra ~0.35us grid step).
    steps = -(-slab_rows // tile)
    if steps % 2 == 1 and steps <= 16:
        t2 = -(-slab_rows // (steps + 1))
        t2 = -(-t2 // SUBLANES) * SUBLANES
        if SUBLANES <= t2 < tile:
            tile = t2
    return tile


def actnorm_forward(z, scale, shift, *, tile_rows=None):
    """ActNorm / Affine forward.

    z:      (..., D) activations.
    scale:  (D,) log-scale parameter.
    shift:  (D,) bias parameter.
    tile_rows: optional override for the row-tile size, in *slab* rows (after
        lane folding); rounded to a multiple of 8 when smaller than the slab.

    Returns (y, log_det) with y.shape == z.shape, y.dtype == z.dtype and
    log_det.shape == (z.shape[0],), matching the PyTorch module.
    """
    d = z.shape[-1]
    assert scale.shape == (d,) and shift.shape == (d,)
    ld_dtype = jnp.promote_types(jnp.asarray(scale).dtype, jnp.float32)
    batch = z.shape[0] if z.ndim > 0 else 1

    # log_det = log(exp(sum(scale))) = sum(scale); parameter-only scalar, so a
    # plain-JAX reduction (no HBM traffic over z) is strictly cheaper here.
    log_det = jnp.full((batch,), jnp.sum(scale.astype(ld_dtype)), dtype=ld_dtype)

    if z.size == 0:
        # TODO(synk): the stateful `data_dep_init_done` flag of the PyTorch module
        # has no pure-functional Pallas equivalent; the caller decides when to run
        # actnorm_data_dep_init.
        return z, log_det

    rows = z.size // d

    # Lane-dense layout: fold consecutive rows into one slab row when D is
    # narrow; pad the row count only when no divisor keeps the slab >=128 lanes.
    fold, padded_rows = _choose_fold(rows, d)
    slab_rows = padded_rows // fold
    width = d * fold

    z2d = z.reshape(rows, d)
    if padded_rows != rows:
        z2d = jnp.pad(z2d, ((0, padded_rows - rows), (0, 0)))
    z2d = z2d.reshape(slab_rows, width)

    # Parameter-only preprocessing (D elements): exp + f32 cast hoisted out of
    # the per-grid-step kernel body.
    exp_scale = jnp.exp(scale.astype(jnp.float32))
    shift32 = shift.astype(jnp.float32)
    if fold > 1:
        exp_scale = jnp.tile(exp_scale, fold)
        shift32 = jnp.tile(shift32, fold)
    exp_scale_row = exp_scale.reshape(1, width)
    shift_row = shift32.reshape(1, width)

    vmem_limit, vmem_budget = _vmem_limits()
    if tile_rows is None:
        tile_rows = _pick_tile_rows(slab_rows, width, z2d.dtype.itemsize, vmem_budget)
    else:
        tile_rows = int(tile_rows)
        if tile_rows >= slab_rows:
            tile_rows = slab_rows
        else:
            # (8,128) rule: blocks smaller than the array must be sublane multiples.
            tile_rows = max(SUBLANES, (tile_rows // SUBLANES) * SUBLANES)
            tile_rows = min(tile_rows, slab_rows)

    grid = (pl.cdiv(slab_rows, tile_rows),)

    y2d = pl.pallas_call(
        _actnorm_fwd_kernel,
        out_shape=jax.ShapeDtypeStruct((slab_rows, width), z.dtype),
        grid_spec=pltpu.PrefetchScalarGridSpec(
            num_scalar_prefetch=0,
            grid=grid,
            in_specs=[
                pl.BlockSpec((tile_rows, width), lambda i: (i, 0)),
                pl.BlockSpec((1, width), lambda i: (0, 0)),
                pl.BlockSpec((1, width), lambda i: (0, 0)),
            ],
            out_specs=pl.BlockSpec((tile_rows, width), lambda i: (i, 0)),
        ),
        compiler_params=pltpu.CompilerParams(
            dimension_semantics=("parallel",),
            vmem_limit_bytes=vmem_limit,
        ),
    )(z2d, exp_scale_row, shift_row)

    if padded_rows != rows:
        y = y2d.reshape(padded_rows, d)[:rows].reshape(z.shape)
    else:
        y = y2d.reshape(z.shape)
    return y, log_det


def actnorm_data_dep_init(z, eps=1e-6):
    """Data-dependent init (first batch): per-feature zero mean / unit variance.

    scale = -log(std(z) + eps), shift = -mean(z) * exp(scale), reduced over all
    leading (batch) dims, matching the Glow/ActNorm intent of the reference.
    """
    # TODO(synk): the stateful `data_dep_init_done` flag of the PyTorch module
    # has no pure-functional Pallas equivalent; the caller decides when to run this.
    z32 = z.astype(jnp.float32).reshape(-1, z.shape[-1])
    std = jnp.std(z32, axis=0, ddof=1)          # torch.std default: unbiased
    mean = jnp.mean(z32, axis=0)
    scale = -jnp.log(std + eps)
    shift = -mean * jnp.exp(scale)
    return scale, shift


if __name__ == "__main__":
    key = jax.random.PRNGKey(0)
    k1, k2, k3, k4, k5, k6 = jax.random.split(key, 6)

    # 1) Module docstring shapes: dim=2, samples=96; data-dependent init then forward.
    samples, dim = 96, 2
    z = jax.random.normal(k1, (samples, dim), dtype=jnp.float32)
    scale, shift = actnorm_data_dep_init(z)
    y, log_det = actnorm_forward(z, scale, shift)
    y, log_det = jax.block_until_ready((y, log_det))
    y_ref = jnp.exp(scale) * z + shift
    assert y.shape == z.shape and y.dtype == z.dtype
    assert log_det.shape == (samples,)
    assert jnp.allclose(y, y_ref, atol=1e-6, rtol=1e-6)
    assert jnp.allclose(log_det, jnp.full((samples,), jnp.sum(scale)), atol=1e-6, rtol=1e-6)
    # Post-init activations should be ~zero-mean, unit-variance per feature.
    assert jnp.allclose(jnp.mean(y, axis=0), 0.0, atol=1e-4)
    assert jnp.allclose(jnp.std(y, axis=0, ddof=1), 1.0, atol=1e-3)

    # 2) Wider feature dim, explicit non-multiple-of-8 tile_rows override
    #    (rounds to 8, multi-step grid with a partial trailing block).
    B2, D2 = 50, 128
    z2 = jax.random.normal(k2, (B2, D2), dtype=jnp.float32)
    sc2 = 0.1 * jax.random.normal(k3, (D2,), dtype=jnp.float32)
    sh2 = jax.random.normal(k4, (D2,), dtype=jnp.float32)
    y2, ld2 = actnorm_forward(z2, sc2, sh2, tile_rows=12)
    y2, ld2 = jax.block_until_ready((y2, ld2))
    assert jnp.allclose(y2, jnp.exp(sc2) * z2 + sh2, atol=1e-5, rtol=1e-5)
    assert jnp.allclose(ld2, jnp.full((B2,), jnp.sum(sc2)), atol=1e-5, rtol=1e-5)

    # 3) Narrow D with many rows: lane folding to a 128-multiple width and a
    #    >=2-step parallel grid (both v7x TensorCores get work).
    B3, D3 = 65536, 2
    z3 = jax.random.normal(k5, (B3, D3), dtype=jnp.float32)
    sc3 = jnp.array([0.3, -0.2], dtype=jnp.float32)
    sh3 = jnp.array([1.5, -0.7], dtype=jnp.float32)
    y3, ld3 = actnorm_forward(z3, sc3, sh3)
    y3, ld3 = jax.block_until_ready((y3, ld3))
    assert jnp.allclose(y3, jnp.exp(sc3) * z3 + sh3, atol=1e-5, rtol=1e-5)
    assert jnp.allclose(ld3, jnp.full((B3,), jnp.sum(sc3)), atol=1e-6, rtol=1e-6)

    # 4) Awkward (prime) row count with narrow D: pad-and-slice fallback keeps
    #    stores lane-dense instead of 2-lane masked vst's.
    B4, D4 = 4099, 2
    z4 = jax.random.normal(k6, (B4, D4), dtype=jnp.float32)
    y4, ld4 = actnorm_forward(z4, sc3, sh3)
    y4, ld4 = jax.block_until_ready((y4, ld4))
    assert y4.shape == z4.shape
    assert jnp.allclose(y4, jnp.exp(sc3) * z4 + sh3, atol=1e-5, rtol=1e-5)
    assert jnp.allclose(ld4, jnp.full((B4,), jnp.sum(sc3)), atol=1e-6, rtol=1e-6)

    # 5) Zero-row input: early-return path.
    z5 = jnp.zeros((0, 4), dtype=jnp.float32)
    y5, ld5 = actnorm_forward(z5, jnp.zeros((4,)), jnp.zeros((4,)))
    y5, ld5 = jax.block_until_ready((y5, ld5))
    assert y5.shape == (0, 4) and ld5.shape == (0,)

    print("KERNEL_OK")
</pallas_src>

<mosaic_0001>
module attributes {stable_mosaic.version = 11 : i64} {
  func.func @_actnorm_fwd_kernel(%arg0: i32, %arg1: memref<1x192xf32, #tpu.memory_space<vmem>>, %arg2: memref<1x192xf32, #tpu.memory_space<vmem>>, %arg3: memref<1x192xf32, #tpu.memory_space<vmem>>, %arg4: memref<1x192xf32, #tpu.memory_space<vmem>>) attributes {dimension_semantics = [#tpu.dimension_semantics<parallel>], iteration_bounds = array<i64: 1>, scalar_prefetch = 0 : i64, scratch_operands = 0 : i64, tpu.core_type = #tpu.core_type<tc>, window_params = [{transform_indices = @transform_0, window_bounds = array<i64: 1, 192>}, {pipeline_mode = #tpu.pipeline_mode<synchronous>, transform_indices = @transform_1, window_bounds = array<i64: 1, 192>}, {pipeline_mode = #tpu.pipeline_mode<synchronous>, transform_indices = @transform_2, window_bounds = array<i64: 1, 192>}, {transform_indices = @transform_3, window_bounds = array<i64: 1, 192>}]} {
    %c0 = arith.constant 0 : index
    %c0_0 = arith.constant 0 : index
    %0 = vector.load %arg1[%c0, %c0_0] : memref<1x192xf32, #tpu.memory_space<vmem>>, vector<1x192xf32>
    %c0_1 = arith.constant 0 : index
    %c0_2 = arith.constant 0 : index
    %1 = vector.load %arg2[%c0_1, %c0_2] : memref<1x192xf32, #tpu.memory_space<vmem>>, vector<1x192xf32>
    %2 = arith.mulf %1, %0 : vector<1x192xf32>
    %c0_3 = arith.constant 0 : index
    %c0_4 = arith.constant 0 : index
    %3 = vector.load %arg3[%c0_3, %c0_4] : memref<1x192xf32, #tpu.memory_space<vmem>>, vector<1x192xf32>
    %4 = arith.addf %2, %3 : vector<1x192xf32>
    %c0_5 = arith.constant 0 : index
    %c0_6 = arith.constant 0 : index
    %5 = vector.load %arg4[%c0_5, %c0_6] : memref<1x192xf32, #tpu.memory_space<vmem>>, vector<1x192xf32>
    tpu.vector_store %arg4[%c0_5, %c0_6], %4 {strides = array<i32>} : memref<1x192xf32, #tpu.memory_space<vmem>>, vector<1x192xf32>,
    return
  }
  func.func @transform_0(%arg0: i32) -> (i32, i32) {
    %c0_i32 = arith.constant 0 : i32
    %c0_i32_0 = arith.constant 0 : i32
    return %arg0, %c0_i32 : i32, i32
  }
  func.func @transform_1(%arg0: i32) -> (i32, i32) {
    %c0_i32 = arith.constant 0 : i32
    %c0_i32_0 = arith.constant 0 : i32
    %c0_i32_1 = arith.constant 0 : i32
    return %c0_i32, %c0_i32_0 : i32, i32
  }
  func.func @transform_2(%arg0: i32) -> (i32, i32) {
    %c0_i32 = arith.constant 0 : i32
    %c0_i32_0 = arith.constant 0 : i32
    %c0_i32_1 = arith.constant 0 : i32
    return %c0_i32, %c0_i32_0 : i32, i32
  }
  func.func @transform_3(%arg0: i32) -> (i32, i32) {
    %c0_i32 = arith.constant 0 : i32
    %c0_i32_0 = arith.constant 0 : i32
    return %arg0, %c0_i32 : i32, i32
  }
}

</mosaic_0001>

<llo_original>
// kernel: tpu_custom_call.1
$region0: #{tpu_custom_call.1}
  #allocation0 [shape = 'u32[]', space=smem, size = 0x4, offset = 0x4, fixed_abs, tag = 'smem constant byte address 0x4 - core index']
  #allocation1 [shape = 'u32[144,128]{1,0:T(1,128)}', space=vmem, size = 0x12000, scoped, tag = 'internal scratch']
  %s0 = inlined_call_operand.hbm [shape: f32[1,192], index: 0, kind: input, shape index: {}]
  %s1 = inlined_call_operand.hbm [shape: f32[1,192], index: 1, kind: input, shape index: {}]
  %s2 = inlined_call_operand.hbm [shape: f32[1,192], index: 2, kind: input, shape index: {}]
  %s3 = inlined_call_operand.hbm [shape: f32[1,192], index: 3, kind: output, shape index: {}]
  %s4 = sld [smem:[#allocation0]]
  $region34: #{tpu_custom_call.1} parent=0
    _
  %s6 = ssub.s32 1, %s4
  %s7 = scalar_select 0, %s6, %s4
  $region1: #{tpu_custom_call.1} parent=0
    #allocation2 [shape = 'u8[1024]{0}', space=vmem, size = 0x400, scoped, tag = 'input window, operand 0, single buffered']
    #allocation3 [shape = 's32[1]{0}', space=sflag, size = 0x4, scoped, tag = 'scoped memory for tpu_custom_call.1']
    #allocation4 [shape = 's32[1]{0}', space=sflag, size = 0x4, scoped, tag = 'scoped memory for tpu_custom_call.1']
    #allocation5 [shape = 'u8[1024]{0}', space=vmem, size = 0x400, scoped, tag = 'input window, operand 1, single buffered']
    #allocation6 [shape = 's32[1]{0}', space=sflag, size = 0x4, scoped, tag = 'scoped memory for tpu_custom_call.1']
    #allocation7 [shape = 'u8[1024]{0}', space=vmem, size = 0x400, scoped, tag = 'input window, operand 2, single buffered']
    #allocation8 [shape = 'u8[1024]{0}', space=vmem, size = 0x400, scoped, tag = 'output window, operand 0, single buffered']
    %8 = vsyncpa [#allocation3], 0
    %9 = vsyncpa [#allocation6], 0
    %10 = vsyncpa [#allocation4], 0
    // Predicated region
    $region2: #{tpu_custom_call.1} parent=1 // pred_check
      _
    $region3: #{tpu_custom_call.1} parent=1 // pred_check_branch
      %12 = sbr.rel (0) target = $region5
    $region4: #{tpu_custom_call.1} parent=1 // pred_region
      %s14 = ssub.s32 32, 32
      %15 = vsyncadd [#allocation3], %s14
      %s17 = sshll.u32 [#allocation2], 4
      %s18 = int_to_ptr.vmem [resolvable:$true] %s17
      %20 = dma.hbm_to_vmem [thread:$0]  %s0, 32, %s18, [#allocation3]
    $region5: #{tpu_custom_call.1} parent=1 // pred_fallthru
      _
    // Predicated region
    $region6: #{tpu_custom_call.1} parent=1 // pred_check
      _
    $region7: #{tpu_custom_call.1} parent=1 // pred_check_branch
      %22 = sbr.rel (0) target = $region9
    $region8: #{tpu_custom_call.1} parent=1 // pred_region
      %s24 = ssub.s32 32, 32
      %25 = vsyncadd [#allocation6], %s24
      %s27 = sshll.u32 [#allocation5], 4
      %s28 = int_to_ptr.vmem [resolvable:$true] %s27
      %30 = dma.hbm_to_vmem [thread:$0]  %s1, 32, %s28, [#allocation6]
    $region9: #{tpu_custom_call.1} parent=1 // pred_fallthru
      _
    // Predicated region
    $region10: #{tpu_custom_call.1} parent=1 // pred_check
      _
    $region11: #{tpu_custom_call.1} parent=1 // pred_check_branch
      %32 = sbr.rel (0) target = $region13
    $region12: #{tpu_custom_call.1} parent=1 // pred_region
      %s34 = ssub.s32 32, 32
      %35 = vsyncadd [#allocation6], %s34
      %s37 = sshll.u32 [#allocation7], 4
      %s38 = int_to_ptr.vmem [resolvable:$true] %s37
      %40 = dma.hbm_to_vmem [thread:$0]  %s2, 32, %s38, [#allocation6]
    $region13: #{tpu_custom_call.1} parent=1 // pred_fallthru
      _
    // Predicated region
    $region14: #{tpu_custom_call.1} parent=1 // pred_check
      _
    $region15: #{tpu_custom_call.1} parent=1 // pred_check_branch
      %42 = sbr.rel (0) target = $region17
    $region16: #{tpu_custom_call.1} parent=1 // pred_region
      %43 = dma.done [#allocation3], 32
    $region17: #{tpu_custom_call.1} parent=1 // pred_fallthru
      _
    // Predicated region
    $region18: #{tpu_custom_call.1} parent=1 // pred_check
      _
    $region19: #{tpu_custom_call.1} parent=1 // pred_check_branch
      %45 = sbr.rel (0) target = $region21
    $region20: #{tpu_custom_call.1} parent=1 // pred_region
      %46 = dma.done [#allocation6], 32
    $region21: #{tpu_custom_call.1} parent=1 // pred_fallthru
      _
    // Predicated region
    $region22: #{tpu_custom_call.1} parent=1 // pred_check
      _
    $region23: #{tpu_custom_call.1} parent=1 // pred_check_branch
      %48 = sbr.rel (0) target = $region25
    $region24: #{tpu_custom_call.1} parent=1 // pred_region
      %49 = dma.done [#allocation6], 32
    $region25: #{tpu_custom_call.1} parent=1 // pred_fallthru
      _
    %v50 = vld [vmem:[#allocation2] sm:$0x3]
    %v51 = vld [vmem:[#allocation5] sm:$0x3]
    %v52 = vmul.f32 %v51, %v50
    %v53 = vld [vmem:[#allocation7] sm:$0x3]
    %v54 = vadd.f32 %v52, %v53
    %v55 = vlaneseq
    %vm56 = vcmp.ge.s32.totalorder %v55, 0
    %vm57 = vcmp.lt.s32.totalorder %v55, 192
    %vm58 = vmand %vm56, %vm57
    %59 = vst.msk [vmem:[#allocation8] sm:$0x3] %vm58, %v54
    // Predicated region
    $region26: #{tpu_custom_call.1} parent=1 // pred_check
      _
    $region27: #{tpu_custom_call.1} parent=1 // pred_check_branch
      %61 = sbr.rel (0) target = $region29
    $region28: #{tpu_custom_call.1} parent=1 // pred_region
      %s63 = ssub.s32 32, 32
      %64 = vsyncadd [#allocation4], %s63
      %s66 = sshll.u32 [#allocation8], 4
      %s67 = int_to_ptr.vmem [resolvable:$true] %s66
      %69 = dma.vmem_to_hbm [thread:$0]  %s67, 32, %s3, [#allocation4]
    $region29: #{tpu_custom_call.1} parent=1 // pred_fallthru
      _
    // Predicated region
    $region30: #{tpu_custom_call.1} parent=1 // pred_check
      _
    $region31: #{tpu_custom_call.1} parent=1 // pred_check_branch
      %71 = sbr.rel (0) target = $region33
    $region32: #{tpu_custom_call.1} parent=1 // pred_region
      %72 = dma.done [#allocation4], 32
    $region33: #{tpu_custom_call.1} parent=1 // pred_fallthru
      _
    %73 = vsyncpa [#allocation3], 1
    %74 = vsyncpa [#allocation6], 1
    %75 = vsyncpa [#allocation4], 1

</llo_original>
